<compile_context>
chip_gen: v5e
topology: v5e:2x2
jax: 0.10.0
libtpu: 0.0.40
codegen_flags: <defaults>
</compile_context>

<pallas_src>
import functools
import math
from collections import OrderedDict

import jax
import jax.numpy as jnp
import numpy as np
from jax.experimental import pallas as pl
from jax.experimental.pallas import tpu as pltpu


def _round_up(x, m):
    return ((x + m - 1) // m) * m


def _vmem_limit(block_bytes):
    # Headroom over the per-step working set, but stay well under v7x's
    # 64 MiB physical VMEM so double-buffering survives on all generations.
    return int(min(max(4 * block_bytes, 32 * 1024 * 1024), 56 * 1024 * 1024))


# ----------------------------------------------------------------------------
# Kernel 1: batched embedding net (flatten -> linear -> L2 normalize)
# ----------------------------------------------------------------------------
def _embed_kernel(x_ref, w_ref, o_ref, acc_ref):
    # x: [B, tk] bf16, w: [tk, F] bf16, acc: [B, F] f32, o: [B, F] bf16
    k = pl.program_id(1)

    @pl.when(k == 0)
    def _init():
        acc_ref[...] = jnp.zeros_like(acc_ref)

    acc_ref[...] += jnp.dot(x_ref[...], w_ref[...],
                            preferred_element_type=jnp.float32)

    @pl.when(k == pl.num_programs(1) - 1)
    def _finalize():
        f = acc_ref[...]
        inv = jax.lax.rsqrt(
            jnp.maximum(jnp.sum(f * f, axis=-1, keepdims=True), 1e-24))
        o_ref[...] = (f * inv).astype(o_ref.dtype)


def embed_pair(x2, w2, *, tk):
    """x2: [2, B, Dp] bf16, w2: [2, Dp, F] bf16 -> [2, B, F] bf16 (L2-normalized)."""
    s_count, bsz, dp = x2.shape
    feat = w2.shape[-1]
    nk = dp // tk
    est = 2 * (bsz * tk * 2 + tk * feat * 2) + 2 * bsz * feat * 2 + bsz * feat * 4
    return pl.pallas_call(
        _embed_kernel,
        out_shape=jax.ShapeDtypeStruct((s_count, bsz, feat), jnp.bfloat16),
        grid_spec=pltpu.PrefetchScalarGridSpec(
            num_scalar_prefetch=0,
            grid=(s_count, nk),
            in_specs=[
                pl.BlockSpec((None, bsz, tk), lambda s, k: (s, 0, k)),
                pl.BlockSpec((None, tk, feat), lambda s, k: (s, k, 0)),
            ],
            out_specs=pl.BlockSpec((None, bsz, feat), lambda s, k: (s, 0, 0)),
            scratch_shapes=[pltpu.VMEM((bsz, feat), jnp.float32)],
        ),
        compiler_params=pltpu.CompilerParams(
            dimension_semantics=("parallel", "arbitrary"),
            vmem_limit_bytes=_vmem_limit(est)),
    )(x2, w2)


# ----------------------------------------------------------------------------
# Kernel 2: fused cosine logits + AM-margin loss terms (both queue "views")
# ----------------------------------------------------------------------------
def _cos_loss_kernel(scale, margin, hard_neg, q_total,
                     lab_ref, p_ref, q0_ref, q1_ref, msk_ref,
                     pos1_ref, neg1_ref, pos2_ref, neg2_ref,
                     m1, l1, g1, t1, m2, l2, g2, t2):
    j = pl.program_id(1)
    neg_inf = jnp.float32(-jnp.inf)

    @pl.when(j == 0)
    def _init():
        for r in (m1, m2, t1, t2):
            r[...] = jnp.full_like(r, -jnp.inf)
        for r in (l1, l2, g1, g2):
            r[...] = jnp.zeros_like(r)

    lab = lab_ref[...]                                   # [tb, 1] int32
    p = p_ref[...]                                       # [tb, F] bf16
    dn = (((1,), (1,)), ((), ()))                        # contract last dims (no .T)
    c0 = jax.lax.dot_general(p, q0_ref[...], dn,
                             preferred_element_type=jnp.float32)   # [tb, tq]
    c1 = jax.lax.dot_general(p, q1_ref[...], dn,
                             preferred_element_type=jnp.float32)   # [tb, tq]
    mrow = msk_ref[...]                                  # [1, tq] f32
    c2 = mrow * c1 + (1.0 - mrow) * c0                   # mix at the output

    tb, tq = c0.shape
    col = jax.lax.broadcasted_iota(jnp.int32, (tb, tq), 1) + j * tq
    valid = col < q_total
    is_lab = (col == lab) & valid

    def online_update(cos, m_s, l_s, g_s, t_s):
        # ---- streaming logsumexp + target logit (AM margin CE) --------------
        logits = cos * scale - jnp.where(is_lab, margin * scale, 0.0)
        logits = jnp.where(valid, logits, neg_inf)
        m_old = m_s[...]
        m_new = jnp.maximum(m_old, jnp.max(logits, axis=-1, keepdims=True))
        l_s[...] = (l_s[...] * jnp.exp(m_old - m_new)
                    + jnp.sum(jnp.exp(logits - m_new), axis=-1, keepdims=True))
        m_s[...] = m_new
        g_s[...] = g_s[...] + jnp.sum(jnp.where(is_lab, logits, 0.0),
                                      axis=-1, keepdims=True)

        # ---- streaming, tie-safe top-k of raw cosines (hard negatives) ------
        vals = jnp.where(valid, cos, neg_inf)            # [tb, tq]
        carry = t_s[...]                                  # [tb, K]
        vcol = jax.lax.broadcasted_iota(jnp.int32, vals.shape, 1)
        ccol = jax.lax.broadcasted_iota(jnp.int32, carry.shape, 1)
        big = jnp.int32(2 ** 30)
        for kk in range(hard_neg):
            mv = jnp.max(vals, axis=-1, keepdims=True)
            mc = jnp.max(carry, axis=-1, keepdims=True)
            take_c = mc >= mv
            mx = jnp.maximum(mv, mc)
            # remove exactly ONE occurrence of the max from whichever source it
            # came from (tie-safe, matches torch.topk multiplicities)
            is_c = (carry == mc) & take_c
            fc = jnp.min(jnp.where(is_c, ccol, big), axis=-1, keepdims=True)
            carry = jnp.where(is_c & (ccol == fc), neg_inf, carry)
            is_v = (vals == mv) & jnp.logical_not(take_c)
            fv = jnp.min(jnp.where(is_v, vcol, big), axis=-1, keepdims=True)
            vals = jnp.where(is_v & (vcol == fv), neg_inf, vals)
            t_s[:, kk:kk + 1] = mx

    online_update(c0, m1, l1, g1, t1)
    online_update(c2, m2, l2, g2, t2)

    @pl.when(j == pl.num_programs(1) - 1)
    def _finalize():
        is_pos = lab >= 0
        is_out = lab == -1

        def fin(m_s, l_s, g_s, t_s, pos_ref, neg_ref):
            lse = m_s[...] + jnp.log(l_s[...])
            pos_ref[...] = jnp.where(is_pos, lse - g_s[...], 0.0)
            neg = jnp.sum(jnp.maximum(t_s[...], 0.0), axis=-1, keepdims=True)
            neg_ref[...] = jnp.where(is_out, neg, 0.0)

        fin(m1, l1, g1, t1, pos1_ref, neg1_ref)
        fin(m2, l2, g2, t2, pos2_ref, neg2_ref)


def fused_cos_margin(p_bf16, q0, q1, mask_row, labels_i32, *,
                     scale, margin, hard_neg, tq=128):
    """Returns (pos1, neg1, pos2, neg2) each [B, 1] f32."""
    bsz, feat = p_bf16.shape
    q_total = q0.shape[0]
    tq = min(tq, q_total)
    tb = min(bsz, 128)
    if bsz % tb:
        tb = bsz
    nb = pl.cdiv(bsz, tb)
    nq = pl.cdiv(q_total, tq)
    kern = functools.partial(_cos_loss_kernel, float(scale), float(margin),
                             int(hard_neg), int(q_total))
    est = (2 * (tb * 4 + tb * feat * 2 + 2 * tq * feat * 2 + tq * 4)
           + 8 * tb * 4 + (6 * tb + 2 * tb * hard_neg) * 4)
    out_block = pl.BlockSpec((tb, 1), lambda i, j: (i, 0))
    pos1, neg1, pos2, neg2 = pl.pallas_call(
        kern,
        out_shape=tuple(jax.ShapeDtypeStruct((bsz, 1), jnp.float32)
                        for _ in range(4)),
        grid_spec=pltpu.PrefetchScalarGridSpec(
            num_scalar_prefetch=0,
            grid=(nb, nq),
            in_specs=[
                pl.BlockSpec((tb, 1), lambda i, j: (i, 0)),       # labels
                pl.BlockSpec((tb, feat), lambda i, j: (i, 0)),    # probe feats
                pl.BlockSpec((tq, feat), lambda i, j: (j, 0)),    # queue[0] tile
                pl.BlockSpec((tq, feat), lambda i, j: (j, 0)),    # queue[1] tile
                pl.BlockSpec((1, tq), lambda i, j: (0, j)),       # mask row tile
            ],
            out_specs=(out_block, out_block, out_block, out_block),
            scratch_shapes=[
                pltpu.VMEM((tb, 1), jnp.float32),          # m1 (running max)
                pltpu.VMEM((tb, 1), jnp.float32),          # l1 (running sumexp)
                pltpu.VMEM((tb, 1), jnp.float32),          # g1 (target logit)
                pltpu.VMEM((tb, hard_neg), jnp.float32),   # t1 (running top-k)
                pltpu.VMEM((tb, 1), jnp.float32),          # m2
                pltpu.VMEM((tb, 1), jnp.float32),          # l2
                pltpu.VMEM((tb, 1), jnp.float32),          # g2
                pltpu.VMEM((tb, hard_neg), jnp.float32),   # t2
            ],
        ),
        compiler_params=pltpu.CompilerParams(
            dimension_semantics=("parallel", "arbitrary"),
            vmem_limit_bytes=_vmem_limit(est)),
    )(labels_i32, p_bf16, q0, q1, mask_row)
    return pos1, neg1, pos2, neg2


# ----------------------------------------------------------------------------
# Host-side glue (LRU, queue management) — mirrors the PyTorch module logic
# ----------------------------------------------------------------------------
class LRU:
    def __init__(self, capacity):
        self.capacity = capacity
        self.map = OrderedDict()          # label -> queue index
        self.free = list(range(capacity))
        self._snapshots = []

    def __contains__(self, label):
        return label in self.map

    def _acquire(self, label):
        if label in self.map:
            self.map.move_to_end(label)
            return self.map[label]
        if self.free:
            idx = self.free.pop(0)
        else:
            _, idx = self.map.popitem(last=False)
        self.map[label] = idx
        return idx

    def get(self, label):
        return self._acquire(label)

    def try_get(self, label):
        self._snapshots.append((OrderedDict(self.map), list(self.free)))
        return self._acquire(label)

    def view(self, label):
        return self.map.get(label, -1)

    def rollback_steps(self, steps):
        state = None
        for _ in range(steps):
            state = self._snapshots.pop()
        if state is not None:
            self.map, self.free = state


class FFC:
    def __init__(self, in_dim, feat_dim, queue_size, scale=32.0, margin=0.4,
                 momentum=0.99, neg_margin=0.25, seed=0):
        self.in_dim = in_dim
        self.feat_dim = feat_dim
        self.queue_size = queue_size
        self.scale = scale
        self.margin = margin
        self.m = momentum
        self.neg_margin = neg_margin          # unused, as in the reference AM path
        self.hard_neg = min(max(int(queue_size * 0.0002), 3), 10)
        self.q_tile = min(128, queue_size)

        # K tiling for the embedding matmul: pad Din to a lane multiple and pick
        # the largest {512,256,128} tile dividing it.
        din_pad = _round_up(in_dim, 128)
        self.din_pad = din_pad
        self.k_tile = next(t for t in (512, 256, 128) if din_pad % t == 0)

        key = jax.random.PRNGKey(seed)
        k_w, k_q = jax.random.split(key)
        # Weight stored pre-transposed [Din_pad, F] (zero rows in padded region).
        w = jax.random.normal(k_w, (in_dim, feat_dim), jnp.float32) / math.sqrt(in_dim)
        w = jnp.pad(w, ((0, din_pad - in_dim), (0, 0)))
        self.w_probe = w
        self.w_gallery = w                    # gallery net copies probe net

        q = jax.random.uniform(k_q, (2, queue_size, feat_dim), jnp.float32)
        q = q / jnp.maximum(jnp.linalg.norm(q, axis=2, keepdims=True), 1e-12)
        self.queue = q.astype(jnp.bfloat16)   # bf16 storage halves queue HBM traffic
        self.mask_row = jnp.zeros((1, queue_size), jnp.float32)   # lane-major mask

        self.lru = LRU(queue_size)
        self.queue_position_dict = {i: 0 for i in range(queue_size)}

    # --- helpers -----------------------------------------------------------
    @staticmethod
    def _label_list(labels):
        if isinstance(labels, (list, tuple)):
            return [int(v) for v in labels]
        return [int(v) for v in np.asarray(jax.device_get(labels))]

    def _embed_probe_gallery(self, p_data, g_data):
        bsz = p_data.shape[0]

        def flat(d):
            x = d.reshape(bsz, -1).astype(jnp.bfloat16)
            return jnp.pad(x, ((0, 0), (0, self.din_pad - self.in_dim)))

        x2 = jnp.stack([flat(p_data), flat(g_data)])                       # [2,B,Dp]
        w2 = jnp.stack([self.w_probe, self.w_gallery]).astype(jnp.bfloat16)
        feats = embed_pair(x2, w2, tk=self.k_tile)                         # [2,B,F]
        return feats[0], feats[1]

    def _momentum_update_gallery(self):
        self.w_gallery = self.m * self.w_gallery + (1.0 - self.m) * self.w_probe

    def _set_mask(self, ones_idx, value):
        if ones_idx:
            idx = jnp.array(sorted(ones_idx), jnp.int32)
            self.mask_row = self.mask_row.at[0, idx].set(value)

    def _margin_losses(self, p_bf16, labels_i32):
        """Equivalent to add_margin(cos1, label) + add_margin(cos2, label)."""
        pos1, neg1, pos2, neg2 = fused_cos_margin(
            p_bf16, self.queue[0], self.queue[1], self.mask_row, labels_i32,
            scale=self.scale, margin=self.margin, hard_neg=self.hard_neg,
            tq=self.q_tile)
        lab = labels_i32
        n_pos = jnp.sum(lab >= 0).astype(jnp.float32)
        n_out = jnp.sum(lab == -1).astype(jnp.float32)

        def combine(pos, neg):
            cls_loss = jnp.where(n_pos > 0,
                                 jnp.sum(pos) / jnp.maximum(n_pos, 1.0), 0.0)
            neg_loss = jnp.where(
                n_out > 0,
                jnp.sum(neg) / jnp.maximum(n_out * self.hard_neg, 1.0), 0.0)
            return cls_loss + neg_loss

        return combine(pos1, neg1) + combine(pos2, neg2)

    # --- forward_impl ------------------------------------------------------
    def forward_impl(self, p_data, g_data, probe_label, gallery_label):
        probe_list = self._label_list(probe_label)
        gallery_list = self._label_list(gallery_label)

        p, g = self._embed_probe_gallery(p_data, g_data)   # one batched launch

        rows, cols, ones_idx = [], [], set()
        for gl in gallery_list:
            if gl not in self.lru:
                idx = self.lru.get(gl)
                rows.append(0)
                cols.append(idx)
                self.queue_position_dict[idx] = 1
            else:
                idx = self.lru.get(gl)
                rows.append(self.queue_position_dict[idx])
                cols.append(idx)
                ones_idx.add(idx)
                self.queue_position_dict[idx] = (self.queue_position_dict[idx] + 1) % 2
        r = jnp.array(rows, jnp.int32)
        c = jnp.array(cols, jnp.int32)
        self.queue = self.queue.at[r, c].set(g)

        fake_labels = [self.lru.view(plab) for plab in probe_list]
        labels = jnp.array(fake_labels, jnp.int32).reshape(-1, 1)

        self._set_mask(ones_idx, 1.0)
        loss = self._margin_losses(p, labels)
        self._set_mask(ones_idx, 0.0)
        return loss

    # --- forward_impl_rollback ---------------------------------------------
    def forward_impl_rollback(self, p_data, g_data, probe_label, gallery_label):
        probe_list = self._label_list(probe_label)
        gallery_list = self._label_list(gallery_label)

        self._momentum_update_gallery()
        p, g = self._embed_probe_gallery(p_data, g_data)

        rows, cols, ones_idx = [], [], set()
        old_state = {}
        steps = 0
        for gl in gallery_list:
            if gl not in self.lru:
                idx = self.lru.try_get(gl)
                rows.append(0)
                cols.append(idx)
                if idx not in old_state:
                    old_state[idx] = self.queue_position_dict[idx]
                self.queue_position_dict[idx] = 1
            else:
                idx = self.lru.try_get(gl)
                if idx not in old_state:
                    old_state[idx] = self.queue_position_dict[idx]
                rows.append(self.queue_position_dict[idx])
                cols.append(idx)
                ones_idx.add(idx)
                self.queue_position_dict[idx] = (self.queue_position_dict[idx] + 1) % 2
            steps += 1
        r = jnp.array(rows, jnp.int32)
        c = jnp.array(cols, jnp.int32)
        old_tensor = self.queue[r, c]
        self.queue = self.queue.at[r, c].set(g)

        fake_labels = [self.lru.view(plab) for plab in probe_list]
        labels = jnp.array(fake_labels, jnp.int32).reshape(-1, 1)

        self._set_mask(ones_idx, 1.0)
        loss = self._margin_losses(p, labels)

        # rollback everything
        self.queue = self.queue.at[r, c].set(old_tensor)
        for k, v in old_state.items():
            self.queue_position_dict[k] = v
        self._set_mask(ones_idx, 0.0)
        self.lru.rollback_steps(steps)
        return loss

    def forward(self, x, y, x_label, y_label):
        # Single host round-trip for labels, before any kernel launch.
        x_list = self._label_list(x_label)
        y_list = self._label_list(y_label)
        loss2 = self.forward_impl_rollback(x, y, x_list, y_list)
        loss1 = self.forward_impl(y, x, y_list, x_list)
        return loss1 + loss2


# ----------------------------------------------------------------------------
if __name__ == "__main__":
    B, C, H, W = 8, 3, 16, 16
    FEAT_DIM = 64
    QUEUE_SIZE = 256

    key = jax.random.PRNGKey(0)
    kx, ky = jax.random.split(key)
    x = jax.random.normal(kx, (B, C, H, W), jnp.float32)   # NCHW, like PyTorch
    y = jax.random.normal(ky, (B, C, H, W), jnp.float32)
    # Partial overlap between probe / gallery labels -> both positive and
    # outlier (-1) rows are exercised in the margin loss.
    x_label = jnp.array([0, 1, 2, 3, 10, 11, 12, 13], jnp.int32)
    y_label = jnp.array([0, 1, 2, 3, 4, 5, 6, 7], jnp.int32)

    model = FFC(in_dim=C * H * W, feat_dim=FEAT_DIM, queue_size=QUEUE_SIZE,
                scale=32.0, margin=0.4, momentum=0.99, seed=0)

    loss = model.forward(x, y, x_label, y_label)
    loss = jax.block_until_ready(loss)
    assert jnp.isfinite(loss), "loss is not finite"
    print("KERNEL_OK")
</pallas_src>

<mosaic_0001>
module attributes {stable_mosaic.version = 11 : i64} {
  func.func @_embed_kernel(%arg0: i32, %arg1: i32, %arg2: memref<1x8x256xbf16, #tpu.memory_space<vmem>>, %arg3: memref<1x256x64xbf16, #tpu.memory_space<vmem>>, %arg4: memref<1x8x64xbf16, #tpu.memory_space<vmem>>, %arg5: memref<8x64xf32, #tpu.memory_space<vmem>>) attributes {dimension_semantics = [#tpu.dimension_semantics<parallel>, #tpu.dimension_semantics<arbitrary>], iteration_bounds = array<i64: 2, 3>, scalar_prefetch = 0 : i64, scratch_operands = 1 : i64, tpu.core_type = #tpu.core_type<tc>, window_params = [{transform_indices = @transform_0, window_bounds = array<i64: 1, 8, 256>}, {transform_indices = @transform_1, window_bounds = array<i64: 1, 256, 64>}, {transform_indices = @transform_2, window_bounds = array<i64: 1, 8, 64>}]} {
    %c0_i32 = arith.constant 0 : i32
    %0 = arith.cmpi eq, %arg1, %c0_i32 : i32
    %1 = arith.extui %0 : i1 to i32
    %c0_i32_0 = arith.constant 0 : i32
    %2 = arith.cmpi ne, %1, %c0_i32_0 : i32
    scf.if %2 {
      %cst_11 = arith.constant 0.000000e+00 : f32
      %14 = vector.broadcast %cst_11 : f32 to vector<8x64xf32>
      %c0_12 = arith.constant 0 : index
      %c0_13 = arith.constant 0 : index
      %15 = vector.load %arg5[%c0_12, %c0_13] : memref<8x64xf32, #tpu.memory_space<vmem>>, vector<8x64xf32>
      tpu.vector_store %arg5[%c0_12, %c0_13], %14 {strides = array<i32>} : memref<8x64xf32, #tpu.memory_space<vmem>>, vector<8x64xf32>,
    } else {
    }
    %c0 = arith.constant 0 : index
    %c0_1 = arith.constant 0 : index
    %3 = vector.load %arg5[%c0, %c0_1] : memref<8x64xf32, #tpu.memory_space<vmem>>, vector<8x64xf32>
    %c0_2 = arith.constant 0 : index
    %c0_3 = arith.constant 0 : index
    %c0_4 = arith.constant 0 : index
    %4 = vector.load %arg2[%c0_2, %c0_3, %c0_4] : memref<1x8x256xbf16, #tpu.memory_space<vmem>>, vector<1x8x256xbf16>
    %5 = vector.shape_cast %4 : vector<1x8x256xbf16> to vector<8x256xbf16>
    %c0_5 = arith.constant 0 : index
    %c0_6 = arith.constant 0 : index
    %c0_7 = arith.constant 0 : index
    %6 = vector.load %arg3[%c0_5, %c0_6, %c0_7] : memref<1x256x64xbf16, #tpu.memory_space<vmem>>, vector<1x256x64xbf16>
    %7 = vector.shape_cast %6 : vector<1x256x64xbf16> to vector<256x64xbf16>
    %cst = arith.constant dense<0.000000e+00> : vector<8x64xf32>
    %8 = tpu.matmul %5, %7, %cst {dimension_numbers = #tpu.dot_dimension_numbers<[1], [0], [0], [1], [0, 0, 1, 1], [], []>} : vector<8x256xbf16>, vector<256x64xbf16>, vector<8x64xf32> -> vector<8x64xf32>
    %9 = arith.addf %3, %8 : vector<8x64xf32>
    %c0_8 = arith.constant 0 : index
    %c0_9 = arith.constant 0 : index
    %10 = vector.load %arg5[%c0_8, %c0_9] : memref<8x64xf32, #tpu.memory_space<vmem>>, vector<8x64xf32>
    tpu.vector_store %arg5[%c0_8, %c0_9], %9 {strides = array<i32>} : memref<8x64xf32, #tpu.memory_space<vmem>>, vector<8x64xf32>,
    %c2_i32 = arith.constant 2 : i32
    %11 = arith.cmpi eq, %arg1, %c2_i32 : i32
    %12 = arith.extui %11 : i1 to i32
    %c0_i32_10 = arith.constant 0 : i32
    %13 = arith.cmpi ne, %12, %c0_i32_10 : i32
    scf.if %13 {
      %c0_11 = arith.constant 0 : index
      %c0_12 = arith.constant 0 : index
      %14 = vector.load %arg5[%c0_11, %c0_12] : memref<8x64xf32, #tpu.memory_space<vmem>>, vector<8x64xf32>
      %15 = arith.mulf %14, %14 : vector<8x64xf32>
      %cst_13 = arith.constant dense<0.000000e+00> : vector<8xf32>
      %16 = vector.multi_reduction <add>, %15, %cst_13 [1] : vector<8x64xf32> to vector<8xf32>
      %17 = vector.shape_cast %16 : vector<8xf32> to vector<8x1xf32>
      %cst_14 = arith.constant 1.000000e-24 : f32
      %18 = vector.broadcast %cst_14 : f32 to vector<8x1xf32>
      %19 = arith.maximumf %17, %18 : vector<8x1xf32>
      %20 = math.rsqrt %19 : vector<8x1xf32>
      %21 = vector.broadcast %20 : vector<8x1xf32> to vector<8x64xf32>
      %22 = arith.mulf %14, %21 : vector<8x64xf32>
      %23 = arith.truncf %22 : vector<8x64xf32> to vector<8x64xbf16>
      %c0_15 = arith.constant 0 : index
      %c0_16 = arith.constant 0 : index
      %c0_17 = arith.constant 0 : index
      %24 = vector.load %arg4[%c0_15, %c0_16, %c0_17] : memref<1x8x64xbf16, #tpu.memory_space<vmem>>, vector<1x8x64xbf16>
      %25 = vector.shape_cast %24 : vector<1x8x64xbf16> to vector<8x64xbf16>
      %26 = vector.shape_cast %23 : vector<8x64xbf16> to vector<1x8x64xbf16>
      tpu.vector_store %arg4[%c0_15, %c0_16, %c0_17], %26 {strides = array<i32>} : memref<1x8x64xbf16, #tpu.memory_space<vmem>>, vector<1x8x64xbf16>,
    } else {
    }
    return
  }
  func.func @transform_0(%arg0: i32, %arg1: i32) -> (i32, i32, i32) {
    %c0_i32 = arith.constant 0 : i32
    %c0_i32_0 = arith.constant 0 : i32
    return %arg0, %c0_i32, %arg1 : i32, i32, i32
  }
  func.func @transform_1(%arg0: i32, %arg1: i32) -> (i32, i32, i32) {
    %c0_i32 = arith.constant 0 : i32
    %c0_i32_0 = arith.constant 0 : i32
    return %arg0, %arg1, %c0_i32 : i32, i32, i32
  }
  func.func @transform_2(%arg0: i32, %arg1: i32) -> (i32, i32, i32) {
    %c0_i32 = arith.constant 0 : i32
    %c0_i32_0 = arith.constant 0 : i32
    %c0_i32_1 = arith.constant 0 : i32
    return %arg0, %c0_i32, %c0_i32_0 : i32, i32, i32
  }
}

</mosaic_0001>

<llo_original>
// kernel: tpu_custom_call.1
$region0: #{tpu_custom_call.1}
  #allocation0 [shape = 'u32[]', space=smem, size = 0x4, offset = 0x4, fixed_abs, tag = 'smem constant byte address 0x4 - core index']
  #allocation1 [shape = 'u32[72,128]{1,0:T(1,128)}', space=vmem, size = 0x9000, scoped, tag = 'internal scratch']
  #allocation2 [shape = 'f32[8,64]{1,0:T(8,128)}', space=vmem, size = 0x1000, scoped, tag = 'scratch operand']
  %s0 = inlined_call_operand.vmem [shape: bf16[2,8,768], index: 0, kind: input, shape index: {}]
  %s1 = inlined_call_operand.vmem [shape: bf16[2,768,64], index: 1, kind: input, shape index: {}]
  %s2 = inlined_call_operand.hbm [shape: bf16[2,8,64], index: 2, kind: output, shape index: {}]
  %s3 = sld [smem:[#allocation0]]
  $region49: #{tpu_custom_call.1} parent=0
    _
  %s5 = ssub.s32 1, %s3
  %s6 = scalar_select 0, %s5, %s3
  $region1: #{tpu_custom_call.1} parent=0
    #allocation3 [shape = 'u8[4096]{0}', space=vmem, size = 0x1000, scoped, tag = 'output window, operand 0']
    #allocation4 [shape = 's32[2]{0}', space=sflag, size = 0x8, scoped, tag = 'scoped memory for tpu_custom_call.1']
    %7 = vsyncpa [#allocation4], 0
    %s8 = scalar_lea.sflag [#allocation4], 1
    %9 = vsyncpa %s8, 0
    loop: start=0, step=1, limit=8
    $region2: #{tpu_custom_call.1} parent=1 // loop_pre_header
      _
    $region3: #{tpu_custom_call.1} parent=1 // loop_header
      %s11 = sphi 0, %s15
      %p12 = scmp.ge.s32.totalorder %s11, 8
      %s18 = sphi 0, %s30
      %s19 = sphi 0, %s26
      %s20 = sphi 0, %s18
      %s21 = sphi 0, %s19
      %s22 = sphi 0, %s20
      %s23 = sphi 0, %s21
      %s35 = sphi 0, %s37
      %s38 = sphi 0, %s35
      %s39 = sphi 0, %s38
      %s55 = sphi 0, %s39
      %s63 = sphi 0, %s65
      %s66 = sphi 0, %s63
      %s67 = sphi 0, %s66
      %s83 = sphi 0, %s67
      %s89 = sphi 0, %s91
      %s92 = sphi 0, %s89
      %s93 = sphi 0, %s92
      %s109 = sphi 0, %s93
    $region4: #{tpu_custom_call.1} parent=1 // loop_header_branch
      %14 = sbr.rel (%p12) target = $region8
    $region5: #{tpu_custom_call.1} parent=1 // loop_body
      %s16 = ssub.s32 %s11, 1
      %s17 = ssub.s32 %s11, 2
      %s24 = sadd.s32 1, %s19
      %p25 = scmp.ge.s32.totalorder %s24, 3
      %s26 = scalar_select %p25, 0, %s24
      %s27 = sadd.s32 1, %s18
      %s28 = scalar_select %p25, %s27, %s18
      %p29 = scmp.ge.s32.totalorder %s28, 2
      %s30 = scalar_select %p29, 0, %s28
      %s31 = ssub.s32 %s18, %s30
      %s32 = ssub.s32 %s19, %s26
      %s33 = sor.u32 %s31, %s32
      %p34 = scmp.eq.s32.totalorder %s33, 0
      %s36 = sadd.s32 %s35, 1
      %s37 = scalar_select %p34, %s35, %s36
      %p40 = pneg %p34
      %p41 = scmp.eq.s32.totalorder %s11, 5
      %p42 = por %p40, %p41
      %p43 = scmp.ne.s32.totalorder %s35, %s38
      %p44 = scmp.eq.s32.totalorder %s11, 0
      %p45 = por %p43, %p44
      %p46 = scmp.ne.s32.totalorder %s35, %s38
      %p47 = scmp.eq.s32.totalorder %s16, 5
      %p48 = por %p46, %p47
      %p49 = scmp.ne.s32.totalorder %s38, %s39
      %p50 = scmp.eq.s32.totalorder %s16, 0
      %p51 = por %p49, %p50
      %p52 = scmp.ne.s32.totalorder %s38, %s39
      %p53 = scmp.eq.s32.totalorder %s17, 5
      %p54 = por %p52, %p53
      %p56 = scmp.ne.s32.totalorder %s39, %s55
      %p57 = scmp.eq.s32.totalorder %s17, 0
      %p58 = por %p56, %p57
      %s59 = ssub.s32 %s18, %s30
      %s60 = ssub.s32 %s19, %s26
      %s61 = sor.u32 %s59, %s60
      %p62 = scmp.eq.s32.totalorder %s61, 0
      %s64 = sadd.s32 %s63, 1
      %s65 = scalar_select %p62, %s63, %s64
      %p68 = pneg %p62
      %p69 = scmp.eq.s32.totalorder %s11, 5
      %p70 = por %p68, %p69
      %p71 = scmp.ne.s32.totalorder %s63, %s66
      %p72 = scmp.eq.s32.totalorder %s11, 0
      %p73 = por %p71, %p72
      %p74 = scmp.ne.s32.totalorder %s63, %s66
      %p75 = scmp.eq.s32.totalorder %s16, 5
      %p76 = por %p74, %p75
      %p77 = scmp.ne.s32.totalorder %s66, %s67
      %p78 = scmp.eq.s32.totalorder %s16, 0
      %p79 = por %p77, %p78
      %p80 = scmp.ne.s32.totalorder %s66, %s67
      %p81 = scmp.eq.s32.totalorder %s17, 5
      %p82 = por %p80, %p81
      %p84 = scmp.ne.s32.totalorder %s67, %s83
      %p85 = scmp.eq.s32.totalorder %s17, 0
      %p86 = por %p84, %p85
      %s87 = ssub.s32 %s18, %s30
      %p88 = scmp.eq.s32.totalorder %s87, 0
      %s90 = sadd.s32 %s89, 1
      %s91 = scalar_select %p88, %s89, %s90
      %p94 = pneg %p88
      %p95 = scmp.eq.s32.totalorder %s11, 5
      %p96 = por %p94, %p95
      %p97 = scmp.ne.s32.totalorder %s89, %s92
      %p98 = scmp.eq.s32.totalorder %s11, 0
      %p99 = por %p97, %p98
      %p100 = scmp.ne.s32.totalorder %s89, %s92
      %p101 = scmp.eq.s32.totalorder %s16, 5
      %p102 = por %p100, %p101
      %p103 = scmp.ne.s32.totalorder %s92, %s93
      %p104 = scmp.eq.s32.totalorder %s16, 0
      %p105 = por %p103, %p104
      %p106 = scmp.ne.s32.totalorder %s92, %s93
      %p107 = scmp.eq.s32.totalorder %s17, 5
      %p108 = por %p106, %p107
      %p110 = scmp.ne.s32.totalorder %s93, %s109
      %p111 = scmp.eq.s32.totalorder %s17, 0
      %p112 = por %p110, %p111
      %p113 = scmp.le.s32.totalorder 1, %s11
      %p114 = scmp.lt.s32.totalorder %s11, 7
      %p115 = pnand %p113, %p114
      %p116 = pneg %p115
      // Predicated region
      $region9: #{tpu_custom_call.1} parent=5 // pred_check
        _
      $region10: #{tpu_custom_call.1} parent=5 // pred_check_branch
        %118 = sbr.rel (%p115) target = $region12
      $region11: #{tpu_custom_call.1} parent=5 // pred_region
        %s119 = ssub.s32 %s11, 1
      $region12: #{tpu_custom_call.1} parent=5 // pred_fallthru
        _
      %p120 = scmp.lt.s32.totalorder %s11, 6
      // Predicated region
      $region13: #{tpu_custom_call.1} parent=5 // pred_check
        %p121 = pneg %p120
      $region14: #{tpu_custom_call.1} parent=5 // pred_check_branch
        %123 = sbr.rel (%p121) target = $region16
      $region15: #{tpu_custom_call.1} parent=5 // pred_region
        // Predicated region
        $region17: #{tpu_custom_call.1} parent=15 // pred_check
          %p124 = pneg %p45
        $region18: #{tpu_custom_call.1} parent=15 // pred_check_branch
          %126 = sbr.rel (%p124) target = $region20
        $region19: #{tpu_custom_call.1} parent=15 // pred_region
          %s127 = smul.u32 2, %s19
          %p128 = scmp.lt.s32.totalorder %s18, 1
          %s129 = scalar_select %p128, %s18, 1
          %p130 = scmp.lt.s32.totalorder %s127, 5
          %s131 = scalar_select %p130, %s127, 5
          %s132 = smul.addr %s129, 6
          %s133 = sadd.s32 %s131, %s132
          %s134 = smul.addr %s133, 4
          %s135 = scalar_lea.vmem %s0, %s134
          %s136 = smul.u32 2, %s19
        $region20: #{tpu_custom_call.1} parent=15 // pred_fallthru
          _
        // Predicated region
        $region21: #{tpu_custom_call.1} parent=15 // pred_check
          %p137 = pneg %p73
        $region22: #{tpu_custom_call.1} parent=15 // pred_check_branch
          %139 = sbr.rel (%p137) target = $region24
        $region23: #{tpu_custom_call.1} parent=15 // pred_region
          %s140 = smul.u32 32, %s19
          %p141 = scmp.lt.s32.totalorder %s18, 1
          %s142 = scalar_select %p141, %s18, 1
          %p143 = scmp.lt.s32.totalorder %s140, 95
          %s144 = scalar_select %p143, %s140, 95
          %s145 = smul.addr %s142, 96
          %s146 = sadd.s32 %s144, %s145
          %s147 = smul.addr %s146, 4
          %s148 = scalar_lea.vmem %s1, %s147
          %s149 = smul.u32 32, %s19
        $region24: #{tpu_custom_call.1} parent=15 // pred_fallthru
          _
      $region16: #{tpu_custom_call.1} parent=5 // pred_fallthru
        _
      %p150 = scmp.le.s32.totalorder 1, %s11
      %p151 = scmp.lt.s32.totalorder %s11, 7
      %p152 = pnand %p150, %p151
      %p153 = pneg %p152
      // Predicated region
      $region25: #{tpu_custom_call.1} parent=5 // pred_check
        _
      $region26: #{tpu_custom_call.1} parent=5 // pred_check_branch
        %155 = sbr.rel (%p152) target = $region28
      $region27: #{tpu_custom_call.1} parent=5 // pred_region
        %s156 = ssub.s32 %s11, 1
        %s157 = smul.u32 2, %s21
        %p158 = scmp.lt.s32.totalorder %s20, 1
        %s159 = scalar_select %p158, %s20, 1
        %p160 = scmp.lt.s32.totalorder %s157, 5
        %s161 = scalar_select %p160, %s157, 5
        %s162 = smul.addr %s159, 6
        %s163 = sadd.s32 %s161, %s162
        %s164 = smul.addr %s163, 4
        %s165 = scalar_lea.vmem %s0, %s164
        %p166 = pneg %p51
        %p167 = pneg %p48
        %s168 = smul.u32 32, %s21
        %p169 = scmp.lt.s32.totalorder %s20, 1
        %s170 = scalar_select %p169, %s20, 1
        %p171 = scmp.lt.s32.totalorder %s168, 95
        %s172 = scalar_select %p171, %s168, 95
        %s173 = smul.addr %s170, 96
        %s174 = sadd.s32 %s172, %s173
        %s175 = smul.addr %s174, 4
        %s176 = scalar_lea.vmem %s1, %s175
        %p177 = pneg %p79
        %p178 = pneg %p76
        %p179 = pneg %p105
        %p180 = pneg %p102
        %s181 = sand.u32 %s92, 1
        %s182 = scalar_lea.sflag [#allocation4], %s181
        %s183 = sand.u32 %s92, 1
        %s184 = smul.addr %s183, 4
        %s185 = scalar_lea.vmem [#allocation3], %s184
        %s186 = smul.u32 2, %s21
        %p187 = scmp.lt.s32.totalorder %s20, 1
        %s188 = scalar_select %p187, %s20, 1
        %p189 = scmp.lt.s32.totalorder %s186, 5
        %s190 = scalar_select %p189, %s186, 5
        %s191 = smul.addr %s188, 6
        %s192 = sadd.s32 %s190, %s191
        %s193 = smul.addr %s192, 4
        %s194 = scalar_lea.vmem %s0, %s193
        %s195 = smul.u32 2, %s21
        %s196 = smul.u32 32, %s21
        %p197 = scmp.lt.s32.totalorder %s20, 1
        %s198 = scalar_select %p197, %s20, 1
        %p199 = scmp.lt.s32.totalorder %s196, 95
        %s200 = scalar_select %p199, %s196, 95
        %s201 = smul.addr %s198, 96
        %s202 = sadd.s32 %s200, %s201
        %s203 = smul.addr %s202, 4
        %s204 = scalar_lea.vmem %s1, %s203
        %s205 = smul.u32 32, %s21
        %p206 = scmp.eq.s32.totalorder %s21, 0
        // Predicated region
        $region29: #{tpu_custom_call.1} parent=27 // pred_check
          %p207 = pneg %p206
        $region30: #{tpu_custom_call.1} parent=27 // pred_check_branch
          %209 = sbr.rel (%p207) target = $region32
        $region31: #{tpu_custom_call.1} parent=27 // pred_region
          %vm210 = vcmask 523264
          %211 = vst.msk [vmem:[#allocation2] sm:$0xff] %vm210, 0.0
        $region32: #{tpu_custom_call.1} parent=27 // pred_fallthru
          _
        %v212 = vld [vmem:[#allocation2] sm:$0xff]
        %v213 = vld [vmem:[%s194] sm:$0xff]
        %v214 = vld [vmem:[%s204] sm:$0xf]
        %v215 = vld [vmem:[%s204 + $0x4] sm:$0xf]
        %v216 = vld [vmem:[%s204 + $0x8] sm:$0xf]
        %v217 = vld [vmem:[%s204 + $0xc] sm:$0xf]
        %v218 = vld [vmem:[%s204 + $0x10] sm:$0xf]
        %v219 = vld [vmem:[%s204 + $0x14] sm:$0xf]
        %v220 = vld [vmem:[%s204 + $0x18] sm:$0xf]
        %v221 = vld [vmem:[%s204 + $0x1c] sm:$0xf]
        %v222 = vld [vmem:[%s204 + $0x20] sm:$0xf]
        %v223 = vld [vmem:[%s204 + $0x24] sm:$0xf]
        %v224 = vld [vmem:[%s204 + $0x28] sm:$0xf]
        %v225 = vld [vmem:[%s204 + $0x2c] sm:$0xf]
        %v226 = vld [vmem:[%s204 + $0x30] sm:$0xf]
        %v227 = vld [vmem:[%s204 + $0x34] sm:$0xf]
        %v228 = vld [vmem:[%s204 + $0x38] sm:$0xf]
        %v229 = vld [vmem:[%s204 + $0x3c] sm:$0xf]
        %v230 = vld [vmem:[%s204 + $0x40] sm:$0xf]
        %v231 = vld [vmem:[%s204 + $0x44] sm:$0xf]
        %v232 = vld [vmem:[%s204 + $0x48] sm:$0xf]
        %v233 = vld [vmem:[%s204 + $0x4c] sm:$0xf]
        %v234 = vld [vmem:[%s204 + $0x50] sm:$0xf]
        %v235 = vld [vmem:[%s204 + $0x54] sm:$0xf]
        %v236 = vld [vmem:[%s204 + $0x58] sm:$0xf]
        %v237 = vld [vmem:[%s204 + $0x5c] sm:$0xf]
        %v238 = vld [vmem:[%s204 + $0x60] sm:$0xf]
        %v239 = vld [vmem:[%s204 + $0x64] sm:$0xf]
        %v240 = vld [vmem:[%s204 + $0x68] sm:$0xf]
        %v241 = vld [vmem:[%s204 + $0x6c] sm:$0xf]
        %v242 = vld [vmem:[%s204 + $0x70] sm:$0xf]
        %v243 = vld [vmem:[%s204 + $0x74] sm:$0xf]
        %v244 = vld [vmem:[%s204 + $0x78] sm:$0xf]
        %v245 = vld [vmem:[%s204 + $0x7c] sm:$0xf]
        %v247 = vunpack.c.l.b16 %v213
        %v248 = vunpack.c.h.b16 %v213
        %v249 = vpack.c.b16 %v247, %v247
        %v250 = vpack.c.b16 %v248, %v248
        %v285 = vunpack.c.l.b16 %v214
        %v286 = vunpack.c.l.b16 %v215
        %v287 = vunpack.c.l.b16 %v216
        %v288 = vunpack.c.l.b16 %v217
        %v289 = vunpack.c.l.b16 %v218
        %v290 = vunpack.c.l.b16 %v219
        %v291 = vunpack.c.l.b16 %v220
        %v292 = vunpack.c.l.b16 %v221
        %v293 = vunpack.c.l.b16 %v222
        %v294 = vunpack.c.l.b16 %v223
        %v295 = vunpack.c.l.b16 %v224
        %v296 = vunpack.c.l.b16 %v225
        %v297 = vunpack.c.l.b16 %v226
        %v298 = vunpack.c.l.b16 %v227
        %v299 = vunpack.c.l.b16 %v228
        %v300 = vunpack.c.l.b16 %v229
        %v301 = vunpack.c.l.b16 %v230
        %v302 = vunpack.c.l.b16 %v231
        %v303 = vunpack.c.l.b16 %v232
        %v304 = vunpack.c.l.b16 %v233
        %v305 = vunpack.c.l.b16 %v234
        %v306 = vunpack.c.l.b16 %v235
        %v307 = vunpack.c.l.b16 %v236
        %v308 = vunpack.c.l.b16 %v237
        %v309 = vunpack.c.l.b16 %v238
        %v310 = vunpack.c.l.b16 %v239
        %v311 = vunpack.c.l.b16 %v240
        %v312 = vunpack.c.l.b16 %v241
        %v313 = vunpack.c.l.b16 %v242
        %v314 = vunpack.c.l.b16 %v243
        %v315 = vunpack.c.l.b16 %v244
        %v316 = vunpack.c.l.b16 %v245
        %v317 = vpack.c.b16 %v286, %v285
        %v318 = vpack.c.b16 %v288, %v287
        %v319 = vpack.c.b16 %v290, %v289
        %v320 = vpack.c.b16 %v292, %v291
        %v321 = vpack.c.b16 %v294, %v293
        %v322 = vpack.c.b16 %v296, %v295
        %v323 = vpack.c.b16 %v298, %v297
        %v324 = vpack.c.b16 %v300, %v299
        %v325 = vpack.c.b16 %v302, %v301
        %v326 = vpack.c.b16 %v304, %v303
        %v327 = vpack.c.b16 %v306, %v305
        %v328 = vpack.c.b16 %v308, %v307
        %v329 = vpack.c.b16 %v310, %v309
        %v330 = vpack.c.b16 %v312, %v311
        %v331 = vpack.c.b16 %v314, %v313
        %v332 = vpack.c.b16 %v316, %v315
        %349 = vmatpush.bf16.msra.mxu0 %v324
        %350 = vmatpush.bf16.msra.mxu0 %v323
        %351 = vmatpush.bf16.msra.mxu0 %v322
        %352 = vmatpush.bf16.msra.mxu0 %v321
        %353 = vmatpush.bf16.msra.mxu0 %v320
        %354 = vmatpush.bf16.msra.mxu0 %v319
        %355 = vmatpush.bf16.msra.mxu0 %v318
        %356 = vmatpush.bf16.msra.mxu0 %v317
        %357 = vmatmul.bf16.gmra.mxu0 %v249
        %v358 = vpop.f32.mrf.mxu0
        %v359 = vadd.f32 0.0, %v358
        %v360 = vpop.f32.mrf.mxu0
        %361 = vdwg.mxu0
        %362 = vmatpush.bf16.msra.mxu0 %v332
        %363 = vmatpush.bf16.msra.mxu0 %v331
        %364 = vmatpush.bf16.msra.mxu0 %v330
        %365 = vmatpush.bf16.msra.mxu0 %v329
        %366 = vmatpush.bf16.msra.mxu0 %v328
        %367 = vmatpush.bf16.msra.mxu0 %v327
        %368 = vmatpush.bf16.msra.mxu0 %v326
        %369 = vmatpush.bf16.msra.mxu0 %v325
        %370 = vmatmul.bf16.gmra.mxu0 %v250
        %v371 = vpop.f32.mrf.mxu0
        %v372 = vadd.f32 %v359, %v371
        %v373 = vpop.f32.mrf.mxu0
        %374 = vdwg.mxu0
        %v375 = vadd.f32 %v212, %v372
        %vm376 = vcmask 523264
        %377 = vst.msk [vmem:[#allocation2] sm:$0xff] %vm376, %v375
        %p378 = scmp.eq.s32.totalorder %s21, 2
        // Predicated region
        $region33: #{tpu_custom_call.1} parent=27 // pred_check
          %p379 = pneg %p378
        $region34: #{tpu_custom_call.1} parent=27 // pred_check_branch
          %381 = sbr.rel (%p379) target = $region36
        $region35: #{tpu_custom_call.1} parent=27 // pred_region
          %v382 = vld [vmem:[#allocation2] sm:$0xff]
          %v383 = vmul.f32 %v382, %v382
          %v384 = vsel %vm376, %v383, 0.0
          %385 = vadd.xlane.f32.xlu0 %v384
          %v386 = vpop.xlane.xlu0 %385
          %v387 = vmax.f32 %v386, 1e-24
          %v388 = vrsqrt.pop %v387
          %v389 = vmul.f32 %v388, %v387
          %v390 = vmul.f32 %v389, %v388
          %v391 = vmul.f32 0.5, %v390
          %v392 = vsub.f32 1.5, %v391
          %v393 = vmul.f32 %v388, %v392
          %vm394 = vweird.f32 %v387
          %vm395 = vweird.f32 %v388
          %vm396 = vmor %vm394, %vm395
          %v397 = vsel %vm396, %v388, %v393
          %v398 = vmul.f32 %v382, %v397
          %v399 = vpack.c.bf16 %v398, %v398
          %vm400 = vcmask 519168
          %401 = vst.msk [vmem:[%s185] sm:$0xf] %vm400, %v399
        $region36: #{tpu_custom_call.1} parent=27 // pred_fallthru
          _
        %s402 = sand.u32 %s92, 1
        %s403 = scalar_lea.sflag [#allocation4], %s402
        %s404 = sand.u32 %s92, 1
        %s405 = smul.addr %s404, 4
        %s406 = scalar_lea.vmem [#allocation3], %s405
        // Predicated region
        $region37: #{tpu_custom_call.1} parent=27 // pred_check
          %p407 = pneg %p102
        $region38: #{tpu_custom_call.1} parent=27 // pred_check_branch
          %409 = sbr.rel (%p407) target = $region40
        $region39: #{tpu_custom_call.1} parent=27 // pred_region
          %411 = vsyncadd %s403, 0
          %s412 = smul.addr %s20, 4
          %s413 = scalar_lea.hbm %s2, %s412
          %s415 = sshll.u32 %s406, 4
          %s416 = int_to_ptr.vmem [resolvable:$true] %s415
          %s417 = sshll.u32 %s413, 4
          %s418 = int_to_ptr.hbm [resolvable:$true] %s417
          %420 = dma.vmem_to_hbm [thread:$0]  %s416, 64, %s418, %s403
        $region40: #{tpu_custom_call.1} parent=27 // pred_fallthru
          _
      $region28: #{tpu_custom_call.1} parent=5 // pred_fallthru
        _
      %p421 = scmp.le.s32.totalorder 2, %s11
      // Predicated region
      $region41: #{tpu_custom_call.1} parent=5 // pred_check
        %p422 = pneg %p421
      $region42: #{tpu_custom_call.1} parent=5 // pred_check_branch
        %424 = sbr.rel (%p422) target = $region44
      $region43: #{tpu_custom_call.1} parent=5 // pred_region
        %s425 = ssub.s32 %s11, 2
        // Predicated region
        $region45: #{tpu_custom_call.1} parent=43 // pred_check
          %p426 = pneg %p108
        $region46: #{tpu_custom_call.1} parent=43 // pred_check_branch
          %428 = sbr.rel (%p426) target = $region48
        $region47: #{tpu_custom_call.1} parent=43 // pred_region
          %s429 = sand.u32 %s93, 1
          %s430 = scalar_lea.sflag [#allocation4], %s429
          %s431 = sand.u32 %s93, 1
          %s432 = smul.addr %s431, 4
          %s433 = scalar_lea.vmem [#allocation3], %s432
          %435 = dma.done %s430, 64
        $region48: #{tpu_custom_call.1} parent=43 // pred_fallthru
          _
      $region44: #{tpu_custom_call.1} parent=5 // pred_fallthru
        _
    $region6: #{tpu_custom_call.1} parent=1 // loop_footer
      %s15 = sadd.s32 1, %s11
    $region7: #{tpu_custom_call.1} parent=1 // loop_footer_branch
      %10 = sbr.rel target = $region3
    $region8: #{tpu_custom_call.1} parent=1 // loop_exit
      _
    %436 = vsyncpa [#allocation4], 1
    %s437 = scalar_lea.sflag [#allocation4], 1
    %438 = vsyncpa %s437, 1

</llo_original>
